<compile_context>
chip_gen: v7x
topology: tpu7x:2x2x1
jax: 0.10.0
libtpu: 0.0.40
codegen_flags: <defaults>
</compile_context>

<pallas_src>
import functools
import math

import jax
import jax.numpy as jnp
from jax.experimental import pallas as pl
from jax.experimental.pallas import tpu as pltpu


def _cross_attention_kernel(x_ref, ctx_ref, wq_ref, bq_ref, wkv_ref, bkv_ref,
                            o_ref, *, batch_block, sq, sk, d, scale,
                            compute_dtype, approx_recip):
    """One grid step = `batch_block` batches.

    x_ref   : (batch_block*Sq, D)  flattened query rows (input dtype)
    ctx_ref : (batch_block*Sk, D)  flattened context rows (input dtype)
    wq_ref  : (D, D)    query weight, (in, out) layout, compute dtype
    bq_ref  : (1, D)    query bias, f32
    wkv_ref : (D, 2D)   fused key|value weight, (in, out), compute dtype
    bkv_ref : (1, 2D)   fused key|value bias, f32
    o_ref   : (batch_block*Sq, D)
    """
    cdt = compute_dtype

    # MXU operands in the compute dtype (bf16 in perf mode); f32 accumulation.
    xm = x_ref[...].astype(cdt)
    cm = ctx_ref[...].astype(cdt)

    # Big-M projections over every batch in the chunk: one (mq,D)@(D,D) matmul
    # and one (mk,D)@(D,2D) matmul (K and V fused into a single wide MXU pass).
    q = jnp.dot(xm, wq_ref[...], preferred_element_type=jnp.float32) + bq_ref[...]
    kv = jnp.dot(cm, wkv_ref[...], preferred_element_type=jnp.float32) + bkv_ref[...]

    # View the chunk as (batch, seq, D) and batch the attention matmuls across
    # the whole chunk: MXU pushes pipeline back-to-back instead of a per-batch
    # dot -> softmax -> dot serialization, and live ranges stay bounded.
    q3 = q.astype(cdt).reshape(batch_block, sq, d)
    k3 = kv[:, :d].astype(cdt).reshape(batch_block, sk, d)
    v3 = kv[:, d:].astype(cdt).reshape(batch_block, sk, d)

    # scores[b,i,j] = q3[b,i,:] . k3[b,j,:] — contraction on the last dims, so
    # no transpose of K is materialized.  Scale is applied to the f32 scores
    # (exactly mirrors the reference op order; folding it into bf16 weights
    # would cost precision).
    scores = jnp.einsum("bqd,bkd->bqk", q3, k3,
                        preferred_element_type=jnp.float32) * scale

    # Softmax in f32.
    scores_max = jnp.max(scores, axis=-1, keepdims=True)
    p = jnp.exp(scores - scores_max)
    denom = jnp.sum(p, axis=-1, keepdims=True)
    if approx_recip:
        attn = p * pl.reciprocal(denom, approx=True)   # EUP slot; ~1e-3 rel err
    else:
        attn = p / denom                               # exact parity with torch.softmax

    out = jnp.einsum("bqk,bkd->bqd", attn.astype(cdt), v3,
                     preferred_element_type=jnp.float32)

    # Single full-width store of the whole chunk — no per-batch sub-(8,128)
    # masked partial stores (matters most for bf16 outputs and v5e's single
    # vector-store slot).
    o_ref[...] = out.reshape(batch_block * sq, d).astype(o_ref.dtype)


def _pick_batch_block(B, Sq, Sk, itemsize):
    """Batches per grid step.

    Targets ~512 query rows per step so the BlockSpec pipeline overlaps
    HBM<->VMEM DMA with compute, while tiny problems (<=1024 total query rows)
    stay a single step: per-step overhead (~0.35us) plus duplicate weight DMA
    per TensorCore dominate there, so the v7x megacore split is deliberately
    not taken for small B.
    """
    sub = max(8, 32 // itemsize)          # sublane packing: 8 f32 / 16 bf16
    if B * Sq <= 1024:
        return B
    per = max(1, min(B, 512 // max(Sq, 1)))
    bb = max(d for d in range(1, per + 1) if B % d == 0)
    # Keep per-step row counts aligned to the sublane packing so blocks stay
    # unmasked.  TODO(synk): pad Sq/Sk up to the packing inside the chunk
    # instead of falling back to a single step.
    if (bb * Sq) % sub or (bb * Sk) % sub:
        return B
    return bb


def cross_attention(x, context, params, *, batch_block=None, mxu_dtype=None,
                    approx_softmax_recip=False):
    """x: (B, Sq, D); context: (B, Sk, D); params: PyTorch-style q/k/v weights.

    mxu_dtype: set to jnp.bfloat16 to run the MXU matmuls with bf16 operands
      (f32 accumulation, f32 softmax) — ~2-4x MXU throughput and half the
      weight DMA/VMEM.  Default None keeps the input dtype (strict parity).
    approx_softmax_recip: use the EUP approximate reciprocal for the softmax
      normalization (perf mode; ~1e-3 relative error).
    """
    B, Sq, D = x.shape
    Bc, Sk, Dc = context.shape
    assert Bc == B and Dc == D
    scale = 1.0 / math.sqrt(D)

    compute_dtype = jnp.dtype(mxu_dtype) if mxu_dtype is not None else jnp.dtype(x.dtype)

    if batch_block is None:
        batch_block = _pick_batch_block(B, Sq, Sk, jnp.dtype(x.dtype).itemsize)
    assert B % batch_block == 0, "batch_block must divide B"
    num_chunks = B // batch_block

    # PyTorch Linear stores W as (out, in); transpose to (in, out) and cast the
    # MXU operands to the compute dtype.  K and V weights are fused so their
    # projection is one wide MXU matmul.  Biases stay f32: they are added to
    # the f32 accumulator and are tiny.
    wq = params["wq"].T.astype(compute_dtype)                                    # (D, D)
    wkv = jnp.concatenate([params["wk"].T, params["wv"].T], axis=1).astype(compute_dtype)  # (D, 2D)
    bq = params["bq"].reshape(1, D).astype(jnp.float32)
    bkv = jnp.concatenate([params["bk"], params["bv"]]).reshape(1, 2 * D).astype(jnp.float32)

    # Collapse batch into the matmul M dimension.
    x2 = x.reshape(B * Sq, D)
    ctx2 = context.reshape(B * Sk, D)

    mq = batch_block * Sq
    mk = batch_block * Sk

    kernel = functools.partial(
        _cross_attention_kernel, batch_block=batch_block, sq=Sq, sk=Sk, d=D,
        scale=scale, compute_dtype=compute_dtype,
        approx_recip=approx_softmax_recip)

    # Grid-invariant weight/bias blocks: when the grid actually pipelines,
    # request a single buffer for them — they are fetched once and never
    # change, so double-buffering only wastes VMEM (v7x has only 64 MiB).
    if num_chunks > 1:
        def w_spec(shape):
            return pl.BlockSpec(shape, lambda g: (0, 0), pipeline_mode=pl.Buffered(1))
    else:
        def w_spec(shape):
            return pl.BlockSpec(shape, lambda g: (0, 0))

    # Explicit VMEM budget: double-buffered activations + weights + f32
    # intermediates, 2x headroom (v5e scoped default is only 16 MiB).
    act_bytes = jnp.dtype(x.dtype).itemsize
    w_bytes = compute_dtype.itemsize
    est = (2 * (mq + mk + mq) * D * act_bytes            # x / ctx / out blocks
           + (D * D + D * 2 * D) * w_bytes + 3 * D * 4   # weights + biases
           + (mq + 2 * mk) * D * 4)                      # f32 q / kv intermediates
    vmem_limit = int(min(64 << 20, max(32 << 20, 2 * est)))

    out2 = pl.pallas_call(
        kernel,
        out_shape=jax.ShapeDtypeStruct((B * Sq, D), x.dtype),
        grid_spec=pltpu.PrefetchScalarGridSpec(
            num_scalar_prefetch=0,
            grid=(num_chunks,),
            in_specs=[
                pl.BlockSpec((mq, D), lambda g: (g, 0)),   # x rows
                pl.BlockSpec((mk, D), lambda g: (g, 0)),   # context rows
                w_spec((D, D)),                            # wq
                w_spec((1, D)),                            # bq
                w_spec((D, 2 * D)),                        # wkv (fused K|V)
                w_spec((1, 2 * D)),                        # bkv (fused)
            ],
            out_specs=pl.BlockSpec((mq, D), lambda g: (g, 0)),
        ),
        compiler_params=pltpu.CompilerParams(
            dimension_semantics=("parallel",),
            vmem_limit_bytes=vmem_limit),
    )(x2, ctx2, wq, bq, wkv, bkv)

    return out2.reshape(B, Sq, D)


def _init_params(key, input_size):
    """Deterministic init matching nn.Linear's shapes: W (out, in), b (out,)."""
    bound = 1.0 / math.sqrt(input_size)
    keys = jax.random.split(key, 6)
    u = lambda k, shape: jax.random.uniform(k, shape, jnp.float32, -bound, bound)
    return {
        "wq": u(keys[0], (input_size, input_size)),
        "bq": u(keys[1], (input_size,)),
        "wk": u(keys[2], (input_size, input_size)),
        "bk": u(keys[3], (input_size,)),
        "wv": u(keys[4], (input_size, input_size)),
        "bv": u(keys[5], (input_size,)),
    }


def _reference(x, context, params, input_size):
    """Pure-JAX reference mirroring the PyTorch forward."""
    q = x @ params["wq"].T + params["bq"]
    k = context @ params["wk"].T + params["bk"]
    v = context @ params["wv"].T + params["bv"]
    scores = jnp.einsum("bqd,bkd->bqk", q, k) / math.sqrt(input_size)
    attn = jax.nn.softmax(scores, axis=-1)
    return jnp.einsum("bqk,bkd->bqd", attn, v)


if __name__ == "__main__":
    B, Sq, Sk, D = 2, 8, 16, 128   # small shapes consistent with the module

    key = jax.random.PRNGKey(0)
    k_params, k_x, k_ctx = jax.random.split(key, 3)

    params = _init_params(k_params, D)
    x = jax.random.normal(k_x, (B, Sq, D), jnp.float32)
    context = jax.random.normal(k_ctx, (B, Sk, D), jnp.float32)

    ref = _reference(x, context, params, D)

    # Strict-parity path: f32 MXU operands, exact softmax division.
    out = jax.block_until_ready(cross_attention(x, context, params))
    assert out.shape == (B, Sq, D)
    assert jnp.allclose(out, ref, atol=2e-3, rtol=2e-3), "f32 kernel mismatch vs reference"

    # Perf path: bf16 MXU operands + EUP approximate reciprocal (looser check).
    out_fast = jax.block_until_ready(
        cross_attention(x, context, params, mxu_dtype=jnp.bfloat16,
                        approx_softmax_recip=True))
    assert jnp.allclose(out_fast, ref, atol=5e-2, rtol=5e-2), "bf16 kernel mismatch vs reference"

    print("KERNEL_OK")
</pallas_src>

<mosaic_0001>
module attributes {stable_mosaic.version = 11 : i64} {
  func.func @_cross_attention_kernel(%arg0: i32, %arg1: memref<16x128xf32, #tpu.memory_space<vmem>>, %arg2: memref<32x128xf32, #tpu.memory_space<vmem>>, %arg3: memref<128x128xf32, #tpu.memory_space<vmem>>, %arg4: memref<1x128xf32, #tpu.memory_space<vmem>>, %arg5: memref<128x256xf32, #tpu.memory_space<vmem>>, %arg6: memref<1x256xf32, #tpu.memory_space<vmem>>, %arg7: memref<16x128xf32, #tpu.memory_space<vmem>>) attributes {dimension_semantics = [#tpu.dimension_semantics<parallel>], iteration_bounds = array<i64: 1>, scalar_prefetch = 0 : i64, scratch_operands = 0 : i64, tpu.core_type = #tpu.core_type<tc>, window_params = [{transform_indices = @transform_0, window_bounds = array<i64: 16, 128>}, {transform_indices = @transform_1, window_bounds = array<i64: 32, 128>}, {pipeline_mode = #tpu.pipeline_mode<synchronous>, transform_indices = @transform_2, window_bounds = array<i64: 128, 128>}, {pipeline_mode = #tpu.pipeline_mode<synchronous>, transform_indices = @transform_3, window_bounds = array<i64: 1, 128>}, {pipeline_mode = #tpu.pipeline_mode<synchronous>, transform_indices = @transform_4, window_bounds = array<i64: 128, 256>}, {pipeline_mode = #tpu.pipeline_mode<synchronous>, transform_indices = @transform_5, window_bounds = array<i64: 1, 256>}, {transform_indices = @transform_6, window_bounds = array<i64: 16, 128>}]} {
    %c0 = arith.constant 0 : index
    %c0_0 = arith.constant 0 : index
    %0 = vector.load %arg1[%c0, %c0_0] : memref<16x128xf32, #tpu.memory_space<vmem>>, vector<16x128xf32>
    %c0_1 = arith.constant 0 : index
    %c0_2 = arith.constant 0 : index
    %1 = vector.load %arg2[%c0_1, %c0_2] : memref<32x128xf32, #tpu.memory_space<vmem>>, vector<32x128xf32>
    %c0_3 = arith.constant 0 : index
    %c0_4 = arith.constant 0 : index
    %2 = vector.load %arg3[%c0_3, %c0_4] : memref<128x128xf32, #tpu.memory_space<vmem>>, vector<128x128xf32>
    %cst = arith.constant dense<0.000000e+00> : vector<16x128xf32>
    %3 = tpu.matmul %0, %2, %cst {dimension_numbers = #tpu.dot_dimension_numbers<[1], [0], [0], [1], [0, 0, 1, 1], [], []>} : vector<16x128xf32>, vector<128x128xf32>, vector<16x128xf32> -> vector<16x128xf32>
    %c0_5 = arith.constant 0 : index
    %c0_6 = arith.constant 0 : index
    %4 = vector.load %arg4[%c0_5, %c0_6] : memref<1x128xf32, #tpu.memory_space<vmem>>, vector<1x128xf32>
    %5 = vector.broadcast %4 : vector<1x128xf32> to vector<16x128xf32>
    %6 = arith.addf %3, %5 : vector<16x128xf32>
    %c0_7 = arith.constant 0 : index
    %c0_8 = arith.constant 0 : index
    %7 = vector.load %arg5[%c0_7, %c0_8] : memref<128x256xf32, #tpu.memory_space<vmem>>, vector<128x256xf32>
    %cst_9 = arith.constant dense<0.000000e+00> : vector<32x256xf32>
    %8 = tpu.matmul %1, %7, %cst_9 {dimension_numbers = #tpu.dot_dimension_numbers<[1], [0], [0], [1], [0, 0, 1, 1], [], []>} : vector<32x128xf32>, vector<128x256xf32>, vector<32x256xf32> -> vector<32x256xf32>
    %c0_10 = arith.constant 0 : index
    %c0_11 = arith.constant 0 : index
    %9 = vector.load %arg6[%c0_10, %c0_11] : memref<1x256xf32, #tpu.memory_space<vmem>>, vector<1x256xf32>
    %10 = vector.broadcast %9 : vector<1x256xf32> to vector<32x256xf32>
    %11 = arith.addf %8, %10 : vector<32x256xf32>
    %12 = vector.shape_cast %6 : vector<16x128xf32> to vector<2x8x128xf32>
    %13 = vector.extract_strided_slice %11 {offsets = [0, 0], sizes = [32, 128], strides = [1, 1]} : vector<32x256xf32> to vector<32x128xf32>
    %14 = vector.shape_cast %13 : vector<32x128xf32> to vector<2x16x128xf32>
    %15 = vector.extract_strided_slice %11 {offsets = [0, 128], sizes = [32, 128], strides = [1, 1]} : vector<32x256xf32> to vector<32x128xf32>
    %16 = vector.shape_cast %15 : vector<32x128xf32> to vector<2x16x128xf32>
    "tpu.trace_start"() <{level = 10 : i32, message = "bqd,bkd->bqk"}> : () -> ()
    %cst_12 = arith.constant dense<0.000000e+00> : vector<2x8x16xf32>
    %17 = tpu.matmul %12, %14, %cst_12 {dimension_numbers = #tpu.dot_dimension_numbers<[2], [2], [1], [1], [0, 0, 0, 1, 1, 1], [0], [0]>} : vector<2x8x128xf32>, vector<2x16x128xf32>, vector<2x8x16xf32> -> vector<2x8x16xf32>
    "tpu.trace_stop"() : () -> ()
    %cst_13 = arith.constant 0.0883883461 : f32
    %18 = vector.broadcast %cst_13 : f32 to vector<2x8x16xf32>
    %19 = arith.mulf %17, %18 : vector<2x8x16xf32>
    %cst_14 = arith.constant dense<0xFF800000> : vector<2x8xf32>
    %20 = vector.multi_reduction <maximumf>, %19, %cst_14 [2] : vector<2x8x16xf32> to vector<2x8xf32>
    %21 = vector.shape_cast %20 : vector<2x8xf32> to vector<2x8x1xf32>
    %22 = vector.broadcast %21 : vector<2x8x1xf32> to vector<2x8x16xf32>
    %23 = arith.subf %19, %22 : vector<2x8x16xf32>
    %24 = math.exp %23 : vector<2x8x16xf32>
    %cst_15 = arith.constant dense<0.000000e+00> : vector<2x8xf32>
    %25 = vector.multi_reduction <add>, %24, %cst_15 [2] : vector<2x8x16xf32> to vector<2x8xf32>
    %26 = vector.shape_cast %25 : vector<2x8xf32> to vector<2x8x1xf32>
    %27 = vector.broadcast %26 : vector<2x8x1xf32> to vector<2x8x16xf32>
    %28 = arith.divf %24, %27 : vector<2x8x16xf32>
    "tpu.trace_start"() <{level = 10 : i32, message = "bqk,bkd->bqd"}> : () -> ()
    %cst_16 = arith.constant dense<0.000000e+00> : vector<2x8x128xf32>
    %29 = tpu.matmul %28, %16, %cst_16 {dimension_numbers = #tpu.dot_dimension_numbers<[2], [1], [1], [2], [0, 0, 0, 1, 1, 2], [0], [0]>} : vector<2x8x16xf32>, vector<2x16x128xf32>, vector<2x8x128xf32> -> vector<2x8x128xf32>
    "tpu.trace_stop"() : () -> ()
    %30 = vector.shape_cast %29 : vector<2x8x128xf32> to vector<16x128xf32>
    %c0_17 = arith.constant 0 : index
    %c0_18 = arith.constant 0 : index
    %31 = vector.load %arg7[%c0_17, %c0_18] : memref<16x128xf32, #tpu.memory_space<vmem>>, vector<16x128xf32>
    tpu.vector_store %arg7[%c0_17, %c0_18], %30 {strides = array<i32>} : memref<16x128xf32, #tpu.memory_space<vmem>>, vector<16x128xf32>,
    return
  }
  func.func @transform_0(%arg0: i32) -> (i32, i32) {
    %c0_i32 = arith.constant 0 : i32
    %c0_i32_0 = arith.constant 0 : i32
    return %arg0, %c0_i32 : i32, i32
  }
  func.func @transform_1(%arg0: i32) -> (i32, i32) {
    %c0_i32 = arith.constant 0 : i32
    %c0_i32_0 = arith.constant 0 : i32
    return %arg0, %c0_i32 : i32, i32
  }
  func.func @transform_2(%arg0: i32) -> (i32, i32) {
    %c0_i32 = arith.constant 0 : i32
    %c0_i32_0 = arith.constant 0 : i32
    %c0_i32_1 = arith.constant 0 : i32
    return %c0_i32, %c0_i32_0 : i32, i32
  }
  func.func @transform_3(%arg0: i32) -> (i32, i32) {
    %c0_i32 = arith.constant 0 : i32
    %c0_i32_0 = arith.constant 0 : i32
    %c0_i32_1 = arith.constant 0 : i32
    return %c0_i32, %c0_i32_0 : i32, i32
  }
  func.func @transform_4(%arg0: i32) -> (i32, i32) {
    %c0_i32 = arith.constant 0 : i32
    %c0_i32_0 = arith.constant 0 : i32
    %c0_i32_1 = arith.constant 0 : i32
    return %c0_i32, %c0_i32_0 : i32, i32
  }
  func.func @transform_5(%arg0: i32) -> (i32, i32) {
    %c0_i32 = arith.constant 0 : i32
    %c0_i32_0 = arith.constant 0 : i32
    %c0_i32_1 = arith.constant 0 : i32
    return %c0_i32, %c0_i32_0 : i32, i32
  }
  func.func @transform_6(%arg0: i32) -> (i32, i32) {
    %c0_i32 = arith.constant 0 : i32
    %c0_i32_0 = arith.constant 0 : i32
    return %arg0, %c0_i32 : i32, i32
  }
}

</mosaic_0001>

<llo_original>
// kernel: tpu_custom_call.1
$region0: #{tpu_custom_call.1}
  #allocation0 [shape = 'u32[]', space=smem, size = 0x4, offset = 0x4, fixed_abs, tag = 'smem constant byte address 0x4 - core index']
  #allocation1 [shape = 'u32[144,128]{1,0:T(1,128)}', space=vmem, size = 0x12000, scoped, tag = 'internal scratch']
  %s0 = inlined_call_operand.hbm [shape: f32[16,128], index: 0, kind: input, shape index: {}]
  %s1 = inlined_call_operand.hbm [shape: f32[32,128], index: 1, kind: input, shape index: {}]
  %s2 = inlined_call_operand.hbm [shape: f32[128,128], index: 2, kind: input, shape index: {}]
  %s3 = inlined_call_operand.vmem [shape: f32[1,128], index: 3, kind: input, shape index: {}]
  %s4 = inlined_call_operand.hbm [shape: f32[128,256], index: 4, kind: input, shape index: {}]
  %s5 = inlined_call_operand.vmem [shape: f32[1,256], index: 5, kind: input, shape index: {}]
  %s6 = inlined_call_operand.hbm [shape: f32[16,128], index: 6, kind: output, shape index: {}]
  %s7 = sld [smem:[#allocation0]]
  $region50: #{tpu_custom_call.1} parent=0
    _
  %s9 = ssub.s32 1, %s7
  %s10 = scalar_select 0, %s9, %s7
  $region1: #{tpu_custom_call.1} parent=0
    #allocation2 [shape = 'u8[8192]{0}', space=vmem, size = 0x2000, scoped, tag = 'input window, operand 0, single buffered']
    #allocation3 [shape = 's32[1]{0}', space=sflag, size = 0x4, scoped, tag = 'scoped memory for tpu_custom_call.1']
    #allocation4 [shape = 's32[1]{0}', space=sflag, size = 0x4, scoped, tag = 'scoped memory for tpu_custom_call.1']
    #allocation5 [shape = 'u8[16384]{0}', space=vmem, size = 0x4000, scoped, tag = 'input window, operand 1, single buffered']
    #allocation6 [shape = 's32[1]{0}', space=sflag, size = 0x4, scoped, tag = 'scoped memory for tpu_custom_call.1']
    #allocation7 [shape = 'u8[65536]{0}', space=vmem, size = 0x10000, scoped, tag = 'input window, operand 2, single buffered']
    #allocation8 [shape = 'u8[131072]{0}', space=vmem, size = 0x20000, scoped, tag = 'input window, operand 4, single buffered']
    #allocation9 [shape = 's32[1]{0}', space=sflag, size = 0x4, scoped, tag = 'scoped memory for tpu_custom_call.1']
    #allocation10 [shape = 'u8[8192]{0}', space=vmem, size = 0x2000, scoped, tag = 'output window, operand 0, single buffered']
    %11 = vsyncpa [#allocation3], 0
    %12 = vsyncpa [#allocation6], 0
    %13 = vsyncpa [#allocation9], 0
    %14 = vsyncpa [#allocation4], 0
    // Predicated region
    $region2: #{tpu_custom_call.1} parent=1 // pred_check
      _
    $region3: #{tpu_custom_call.1} parent=1 // pred_check_branch
      %16 = sbr.rel (0) target = $region5
    $region4: #{tpu_custom_call.1} parent=1 // pred_region
      %s18 = ssub.s32 256, 256
      %19 = vsyncadd [#allocation3], %s18
      %s20 = sshll.u32 [#allocation2], 4
      %s21 = int_to_ptr.vmem [resolvable:$true] %s20
      %26 = dma.hbm_to_vmem [thread:$0]  %s0, 256, %s21, [#allocation3], 128, 128, 8
    $region5: #{tpu_custom_call.1} parent=1 // pred_fallthru
      _
    // Predicated region
    $region6: #{tpu_custom_call.1} parent=1 // pred_check
      _
    $region7: #{tpu_custom_call.1} parent=1 // pred_check_branch
      %28 = sbr.rel (0) target = $region9
    $region8: #{tpu_custom_call.1} parent=1 // pred_region
      %s30 = ssub.s32 512, 512
      %31 = vsyncadd [#allocation6], %s30
      %s32 = sshll.u32 [#allocation5], 4
      %s33 = int_to_ptr.vmem [resolvable:$true] %s32
      %38 = dma.hbm_to_vmem [thread:$0]  %s1, 512, %s33, [#allocation6], 128, 128, 8
    $region9: #{tpu_custom_call.1} parent=1 // pred_fallthru
      _
    // Predicated region
    $region10: #{tpu_custom_call.1} parent=1 // pred_check
      _
    $region11: #{tpu_custom_call.1} parent=1 // pred_check_branch
      %40 = sbr.rel (0) target = $region13
    $region12: #{tpu_custom_call.1} parent=1 // pred_region
      %s42 = ssub.s32 2048, 2048
      %43 = vsyncadd [#allocation6], %s42
      %s44 = sshll.u32 [#allocation7], 4
      %s45 = int_to_ptr.vmem [resolvable:$true] %s44
      %50 = dma.hbm_to_vmem [thread:$0]  %s2, 2048, %s45, [#allocation6], 128, 128, 8
    $region13: #{tpu_custom_call.1} parent=1 // pred_fallthru
      _
    // Predicated region
    $region14: #{tpu_custom_call.1} parent=1 // pred_check
      _
    $region15: #{tpu_custom_call.1} parent=1 // pred_check_branch
      %52 = sbr.rel (0) target = $region17
    $region16: #{tpu_custom_call.1} parent=1 // pred_region
      _
    $region17: #{tpu_custom_call.1} parent=1 // pred_fallthru
      _
    // Predicated region
    $region18: #{tpu_custom_call.1} parent=1 // pred_check
      _
    $region19: #{tpu_custom_call.1} parent=1 // pred_check_branch
      %54 = sbr.rel (0) target = $region21
    $region20: #{tpu_custom_call.1} parent=1 // pred_region
      %s56 = ssub.s32 4096, 4096
      %57 = vsyncadd [#allocation9], %s56
      %s58 = sshll.u32 [#allocation8], 4
      %s59 = int_to_ptr.vmem [resolvable:$true] %s58
      %64 = dma.hbm_to_vmem [thread:$0]  %s4, 4096, %s59, [#allocation9], 256, 256, 16
    $region21: #{tpu_custom_call.1} parent=1 // pred_fallthru
      _
    // Predicated region
    $region22: #{tpu_custom_call.1} parent=1 // pred_check
      _
    $region23: #{tpu_custom_call.1} parent=1 // pred_check_branch
      %66 = sbr.rel (0) target = $region25
    $region24: #{tpu_custom_call.1} parent=1 // pred_region
      _
    $region25: #{tpu_custom_call.1} parent=1 // pred_fallthru
      _
    // Predicated region
    $region26: #{tpu_custom_call.1} parent=1 // pred_check
      _
    $region27: #{tpu_custom_call.1} parent=1 // pred_check_branch
      %68 = sbr.rel (0) target = $region29
    $region28: #{tpu_custom_call.1} parent=1 // pred_region
      %69 = dma.done [#allocation3], 256
    $region29: #{tpu_custom_call.1} parent=1 // pred_fallthru
      _
    // Predicated region
    $region30: #{tpu_custom_call.1} parent=1 // pred_check
      _
    $region31: #{tpu_custom_call.1} parent=1 // pred_check_branch
      %71 = sbr.rel (0) target = $region33
    $region32: #{tpu_custom_call.1} parent=1 // pred_region
      %72 = dma.done [#allocation6], 512
    $region33: #{tpu_custom_call.1} parent=1 // pred_fallthru
      _
    // Predicated region
    $region34: #{tpu_custom_call.1} parent=1 // pred_check
      _
    $region35: #{tpu_custom_call.1} parent=1 // pred_check_branch
      %74 = sbr.rel (0) target = $region37
    $region36: #{tpu_custom_call.1} parent=1 // pred_region
      %75 = dma.done [#allocation6], 2048
    $region37: #{tpu_custom_call.1} parent=1 // pred_fallthru
      _
    // Predicated region
    $region38: #{tpu_custom_call.1} parent=1 // pred_check
      _
    $region39: #{tpu_custom_call.1} parent=1 // pred_check_branch
      %77 = sbr.rel (0) target = $region41
    $region40: #{tpu_custom_call.1} parent=1 // pred_region
      %78 = dma.done [#allocation9], 4096
    $region41: #{tpu_custom_call.1} parent=1 // pred_fallthru
      _
    %v79 = vld [vmem:[#allocation2] sm:$0xff]
    %v80 = vld [vmem:[#allocation2 + $0x8] sm:$0xff]
    %v81 = vld [vmem:[#allocation5] sm:$0xff]
    %v82 = vld [vmem:[#allocation5 + $0x8] sm:$0xff]
    %v83 = vld [vmem:[#allocation5 + $0x10] sm:$0xff]
    %v84 = vld [vmem:[#allocation5 + $0x18] sm:$0xff]
    %v85 = vld [vmem:[#allocation7] sm:$0xff]
    %v86 = vld [vmem:[#allocation7 + $0x8] sm:$0xff]
    %v87 = vld [vmem:[#allocation7 + $0x10] sm:$0xff]
    %v88 = vld [vmem:[#allocation7 + $0x18] sm:$0xff]
    %v89 = vld [vmem:[#allocation7 + $0x20] sm:$0xff]
    %v90 = vld [vmem:[#allocation7 + $0x28] sm:$0xff]
    %v91 = vld [vmem:[#allocation7 + $0x30] sm:$0xff]
    %v92 = vld [vmem:[#allocation7 + $0x38] sm:$0xff]
    %v93 = vld [vmem:[#allocation7 + $0x40] sm:$0xff]
    %v94 = vld [vmem:[#allocation7 + $0x48] sm:$0xff]
    %v95 = vld [vmem:[#allocation7 + $0x50] sm:$0xff]
    %v96 = vld [vmem:[#allocation7 + $0x58] sm:$0xff]
    %v97 = vld [vmem:[#allocation7 + $0x60] sm:$0xff]
    %v98 = vld [vmem:[#allocation7 + $0x68] sm:$0xff]
    %v99 = vld [vmem:[#allocation7 + $0x70] sm:$0xff]
    %v100 = vld [vmem:[#allocation7 + $0x78] sm:$0xff]
    %v101 = vld [vmem:[%s3] sm:$0x1]
    %v103 = vlaneseq
    %v104 = vshrl.u32 %v103, 7
    %v105 = vsub.s32 0, %v104
    %v106 = vrot.slane %v101, %v105
    %108 = vmatprep.subr.mxu0 0.0
    %109 = vmatpush1.msra.mxu0 %v85
    %110 = vmatprep.subr.mxu0 0.0
    %111 = vmatpush1.msra.mxu0 %v86
    %112 = vmatprep.subr.mxu0 0.0
    %113 = vmatpush1.msra.mxu0 %v87
    %114 = vmatprep.subr.mxu0 0.0
    %115 = vmatpush1.msra.mxu0 %v88
    %116 = vmatprep.subr.mxu0 0.0
    %117 = vmatpush1.msra.mxu0 %v89
    %118 = vmatprep.subr.mxu0 0.0
    %119 = vmatpush1.msra.mxu0 %v90
    %120 = vmatprep.subr.mxu0 0.0
    %121 = vmatpush1.msra.mxu0 %v91
    %122 = vmatprep.subr.mxu0 0.0
    %123 = vmatpush1.msra.mxu0 %v92
    %124 = vmatprep.subr.mxu0 0.0
    %125 = vmatpush1.msra.mxu0 %v93
    %126 = vmatprep.subr.mxu0 0.0
    %127 = vmatpush1.msra.mxu0 %v94
    %128 = vmatprep.subr.mxu0 0.0
    %129 = vmatpush1.msra.mxu0 %v95
    %130 = vmatprep.subr.mxu0 0.0
    %131 = vmatpush1.msra.mxu0 %v96
    %132 = vmatprep.subr.mxu0 0.0
    %133 = vmatpush1.msra.mxu0 %v97
    %134 = vmatprep.subr.mxu0 0.0
    %135 = vmatpush1.msra.mxu0 %v98
    %136 = vmatprep.subr.mxu0 0.0
    %137 = vmatpush1.msra.mxu0 %v99
    %138 = vmatprep.subr.mxu0 0.0
    %139 = vmatpush1.msra.mxu0 %v100
    %140 = vmatprep.subr.mxu0 0.0
    %141 = vmatpush1.msra.mxu0 0.0
    %142 = vmatprep.subr.mxu0 0.0
    %143 = vmatpush1.msra.mxu0 0.0
    %144 = vmatprep.subr.mxu0 0.0
    %145 = vmatpush1.msra.mxu0 0.0
    %146 = vmatprep.subr.mxu0 0.0
    %147 = vmatpush1.msra.mxu0 0.0
    %148 = vmatprep.subr.mxu0 0.0
    %149 = vmatpush1.msra.mxu0 0.0
    %150 = vmatprep.subr.mxu0 0.0
    %151 = vmatpush1.msra.mxu0 0.0
    %152 = vmatprep.subr.mxu0 0.0
    %153 = vmatpush1.msra.mxu0 0.0
    %154 = vmatprep.subr.mxu0 0.0
    %155 = vmatpush1.msra.mxu0 0.0
    %156 = vmatprep.subr.mxu0 0.0
    %157 = vmatpush1.msra.mxu0 0.0
    %158 = vmatprep.subr.mxu0 0.0
    %159 = vmatpush1.msra.mxu0 0.0
    %160 = vmatprep.subr.mxu0 0.0
    %161 = vmatpush1.msra.mxu0 0.0
    %162 = vmatprep.subr.mxu0 0.0
    %163 = vmatpush1.msra.mxu0 0.0
    %164 = vmatprep.subr.mxu0 0.0
    %165 = vmatpush1.msra.mxu0 0.0
    %166 = vmatprep.subr.mxu0 0.0
    %167 = vmatpush1.msra.mxu0 0.0
    %168 = vmatprep.subr.mxu0 0.0
    %169 = vmatpush1.msra.mxu0 0.0
    %170 = vmatprep.subr.mxu0 0.0
    %171 = vmatpush1.msra.mxu0 0.0
    %172 = vmatprep.mubr.f32.mxu0 0.0
    %173 = vmatmul.mubr.f32.gmra.mrb[0].mxu0 %v79
    %v174 = vpop.f32.mrb[0].mxu0
    %v175 = vadd.f32 %v106, %v174
    %v176 = vpop.f32.mrb[0].mxu0
    %177 = vmatprep.mubr.f32.mxu0 0.0
    %178 = vmatmul.mubr.f32.gmra.mrb[0].mxu0 %v80
    %v179 = vpop.f32.mrb[0].mxu0
    %v180 = vadd.f32 %v106, %v179
    %v181 = vpop.f32.mrb[0].mxu0
    %182 = vdwg.mxu0
    %v183 = vld [vmem:[#allocation8] sm:$0xff]
    %v184 = vld [vmem:[#allocation8 + $0x8] sm:$0xff]
    %v185 = vld [vmem:[#allocation8 + $0x10] sm:$0xff]
    %v186 = vld [vmem:[#allocation8 + $0x18] sm:$0xff]
    %v187 = vld [vmem:[#allocation8 + $0x20] sm:$0xff]
    %v188 = vld [vmem:[#allocation8 + $0x28] sm:$0xff]
    %v189 = vld [vmem:[#allocation8 + $0x30] sm:$0xff]
    %v190 = vld [vmem:[#allocation8 + $0x38] sm:$0xff]
    %v191 = vld [vmem:[#allocation8 + $0x40] sm:$0xff]
    %v192 = vld [vmem:[#allocation8 + $0x48] sm:$0xff]
    %v193 = vld [vmem:[#allocation8 + $0x50] sm:$0xff]
    %v194 = vld [vmem:[#allocation8 + $0x58] sm:$0xff]
    %v195 = vld [vmem:[#allocation8 + $0x60] sm:$0xff]
    %v196 = vld [vmem:[#allocation8 + $0x68] sm:$0xff]
    %v197 = vld [vmem:[#allocation8 + $0x70] sm:$0xff]
    %v198 = vld [vmem:[#allocation8 + $0x78] sm:$0xff]
    %v199 = vld [vmem:[#allocation8 + $0x80] sm:$0xff]
    %v200 = vld [vmem:[#allocation8 + $0x88] sm:$0xff]
    %v201 = vld [vmem:[#allocation8 + $0x90] sm:$0xff]
    %v202 = vld [vmem:[#allocation8 + $0x98] sm:$0xff]
    %v203 = vld [vmem:[#allocation8 + $0xa0] sm:$0xff]
    %v204 = vld [vmem:[#allocation8 + $0xa8] sm:$0xff]
    %v205 = vld [vmem:[#allocation8 + $0xb0] sm:$0xff]
    %v206 = vld [vmem:[#allocation8 + $0xb8] sm:$0xff]
    %v207 = vld [vmem:[#allocation8 + $0xc0] sm:$0xff]
    %v208 = vld [vmem:[#allocation8 + $0xc8] sm:$0xff]
    %v209 = vld [vmem:[#allocation8 + $0xd0] sm:$0xff]
    %v210 = vld [vmem:[#allocation8 + $0xd8] sm:$0xff]
    %v211 = vld [vmem:[#allocation8 + $0xe0] sm:$0xff]
    %v212 = vld [vmem:[#allocation8 + $0xe8] sm:$0xff]
    %v213 = vld [vmem:[#allocation8 + $0xf0] sm:$0xff]
    %v214 = vld [vmem:[#allocation8 + $0xf8] sm:$0xff]
    %v215 = vld [vmem:[%s5] sm:$0x3]
    %v217 = vlaneseq
    %v218 = vshrl.u32 %v217, 7
    %v219 = vsub.s32 0, %v218
    %v220 = vrot.slane %v215, %v219
    %v221 = vlaneseq
    %v222 = vshrl.u32 %v221, 7
    %v223 = vsub.s32 1, %v222
    %v224 = vrot.slane %v215, %v223
    %227 = vmatprep.subr.mxu0 %v184
    %228 = vmatpush1.msra.mxu0 %v183
    %229 = vmatprep.subr.mxu0 %v186
    %230 = vmatpush1.msra.mxu0 %v185
    %231 = vmatprep.subr.mxu0 %v188
    %232 = vmatpush1.msra.mxu0 %v187
    %233 = vmatprep.subr.mxu0 %v190
    %234 = vmatpush1.msra.mxu0 %v189
    %235 = vmatprep.subr.mxu0 %v192
    %236 = vmatpush1.msra.mxu0 %v191
    %237 = vmatprep.subr.mxu0 %v194
    %238 = vmatpush1.msra.mxu0 %v193
    %239 = vmatprep.subr.mxu0 %v196
    %240 = vmatpush1.msra.mxu0 %v195
    %241 = vmatprep.subr.mxu0 %v198
    %242 = vmatpush1.msra.mxu0 %v197
    %243 = vmatprep.subr.mxu0 %v200
    %244 = vmatpush1.msra.mxu0 %v199
    %245 = vmatprep.subr.mxu0 %v202
    %246 = vmatpush1.msra.mxu0 %v201
    %247 = vmatprep.subr.mxu0 %v204
    %248 = vmatpush1.msra.mxu0 %v203
    %249 = vmatprep.subr.mxu0 %v206
    %250 = vmatpush1.msra.mxu0 %v205
    %251 = vmatprep.subr.mxu0 %v208
    %252 = vmatpush1.msra.mxu0 %v207
    %253 = vmatprep.subr.mxu0 %v210
    %254 = vmatpush1.msra.mxu0 %v209
    %255 = vmatprep.subr.mxu0 %v212
    %256 = vmatpush1.msra.mxu0 %v211
    %257 = vmatprep.subr.mxu0 %v214
    %258 = vmatpush1.msra.mxu0 %v213
    %259 = vmatprep.subr.mxu0 0.0
    %260 = vmatpush1.msra.mxu0 0.0
    %261 = vmatprep.subr.mxu0 0.0
    %262 = vmatpush1.msra.mxu0 0.0
    %263 = vmatprep.subr.mxu0 0.0
    %264 = vmatpush1.msra.mxu0 0.0
    %265 = vmatprep.subr.mxu0 0.0
    %266 = vmatpush1.msra.mxu0 0.0
    %267 = vmatprep.subr.mxu0 0.0
    %268 = vmatpush1.msra.mxu0 0.0
    %269 = vmatprep.subr.mxu0 0.0
    %270 = vmatpush1.msra.mxu0 0.0
    %271 = vmatprep.subr.mxu0 0.0
    %272 = vmatpush1.msra.mxu0 0.0
    %273 = vmatprep.subr.mxu0 0.0
    %274 = vmatpush1.msra.mxu0 0.0
    %275 = vmatprep.subr.mxu0 0.0
    %276 = vmatpush1.msra.mxu0 0.0
    %277 = vmatprep.subr.mxu0 0.0
    %278 = vmatpush1.msra.mxu0 0.0
    %279 = vmatprep.subr.mxu0 0.0
    %280 = vmatpush1.msra.mxu0 0.0
    %281 = vmatprep.subr.mxu0 0.0
    %282 = vmatpush1.msra.mxu0 0.0
    %283 = vmatprep.subr.mxu0 0.0
    %284 = vmatpush1.msra.mxu0 0.0
    %285 = vmatprep.subr.mxu0 0.0
    %286 = vmatpush1.msra.mxu0 0.0
    %287 = vmatprep.subr.mxu0 0.0
    %288 = vmatpush1.msra.mxu0 0.0
    %289 = vmatprep.subr.mxu0 0.0
    %290 = vmatpush1.msra.mxu0 0.0
    %291 = vmatprep.mubr.f32.mxu0 0.0
    %292 = vmatmul.mubr.f32.gmra.mrb[0].mxu0 %v81
    %v293 = vpop.f32.mrb[0].mxu0
    %v294 = vadd.f32 %v220, %v293
    %v295 = vpop.f32.mrb[0].mxu0
    %v296 = vadd.f32 %v224, %v295
    %297 = vmatprep.mubr.f32.mxu0 0.0
    %298 = vmatmul.mubr.f32.gmra.mrb[0].mxu0 %v82
    %v299 = vpop.f32.mrb[0].mxu0
    %v300 = vadd.f32 %v220, %v299
    %v301 = vpop.f32.mrb[0].mxu0
    %v302 = vadd.f32 %v224, %v301
    %303 = vmatprep.mubr.f32.mxu0 0.0
    %304 = vmatmul.mubr.f32.gmra.mrb[0].mxu0 %v83
    %v305 = vpop.f32.mrb[0].mxu0
    %v306 = vadd.f32 %v220, %v305
    %v307 = vpop.f32.mrb[0].mxu0
    %v308 = vadd.f32 %v224, %v307
    %309 = vmatprep.mubr.f32.mxu0 0.0
    %310 = vmatmul.mubr.f32.gmra.mrb[0].mxu0 %v84
    %v311 = vpop.f32.mrb[0].mxu0
    %v312 = vadd.f32 %v220, %v311
    %v313 = vpop.f32.mrb[0].mxu0
    %v314 = vadd.f32 %v224, %v313
    %315 = vdwg.mxu0
    %316 = vmatprep.subr.mxu0 0.0
    %317 = vmatpush1.xpose.msra.mxu0 %v294
    %318 = vmatprep.subr.mxu0 0.0
    %319 = vmatpush1.xpose.msra.mxu0 %v300
    %320 = vmatprep.subr.mxu0 0.0
    %321 = vmatpush1.xpose.msra.mxu0 0.0
    %322 = vmatprep.subr.mxu0 0.0
    %323 = vmatpush1.xpose.msra.mxu0 0.0
    %324 = vmatprep.subr.mxu0 0.0
    %325 = vmatpush1.xpose.msra.mxu0 0.0
    %326 = vmatprep.subr.mxu0 0.0
    %327 = vmatpush1.xpose.msra.mxu0 0.0
    %328 = vmatprep.subr.mxu0 0.0
    %329 = vmatpush1.xpose.msra.mxu0 0.0
    %330 = vmatprep.subr.mxu0 0.0
    %331 = vmatpush1.xpose.msra.mxu0 0.0
    %332 = vmatprep.subr.mxu0 0.0
    %333 = vmatpush1.xpose.msra.mxu0 0.0
    %334 = vmatprep.subr.mxu0 0.0
    %335 = vmatpush1.xpose.msra.mxu0 0.0
    %336 = vmatprep.subr.mxu0 0.0
    %337 = vmatpush1.xpose.msra.mxu0 0.0
    %338 = vmatprep.subr.mxu0 0.0
    %339 = vmatpush1.xpose.msra.mxu0 0.0
    %340 = vmatprep.subr.mxu0 0.0
    %341 = vmatpush1.xpose.msra.mxu0 0.0
    %342 = vmatprep.subr.mxu0 0.0
    %343 = vmatpush1.xpose.msra.mxu0 0.0
    %344 = vmatprep.subr.mxu0 0.0
    %345 = vmatpush1.xpose.msra.mxu0 0.0
    %346 = vmatprep.subr.mxu0 0.0
    %347 = vmatpush1.xpose.msra.mxu0 0.0
    %348 = vmatprep.subr.mxu0 0.0
    %349 = vmatpush1.xpose.msra.mxu0 0.0
    %350 = vmatprep.subr.mxu0 0.0
    %351 = vmatpush1.xpose.msra.mxu0 0.0
    %352 = vmatprep.subr.mxu0 0.0
    %353 = vmatpush1.xpose.msra.mxu0 0.0
    %354 = vmatprep.subr.mxu0 0.0
    %355 = vmatpush1.xpose.msra.mxu0 0.0
    %356 = vmatprep.subr.mxu0 0.0
    %357 = vmatpush1.xpose.msra.mxu0 0.0
    %358 = vmatprep.subr.mxu0 0.0
    %359 = vmatpush1.xpose.msra.mxu0 0.0
    %360 = vmatprep.subr.mxu0 0.0
    %361 = vmatpush1.xpose.msra.mxu0 0.0
    %362 = vmatprep.subr.mxu0 0.0
    %363 = vmatpush1.xpose.msra.mxu0 0.0
    %364 = vmatprep.subr.mxu0 0.0
    %365 = vmatpush1.xpose.msra.mxu0 0.0
    %366 = vmatprep.subr.mxu0 0.0
    %367 = vmatpush1.xpose.msra.mxu0 0.0
    %368 = vmatprep.subr.mxu0 0.0
    %369 = vmatpush1.xpose.msra.mxu0 0.0
    %370 = vmatprep.subr.mxu0 0.0
    %371 = vmatpush1.xpose.msra.mxu0 0.0
    %372 = vmatprep.subr.mxu0 0.0
    %373 = vmatpush1.xpose.msra.mxu0 0.0
    %374 = vmatprep.subr.mxu0 0.0
    %375 = vmatpush1.xpose.msra.mxu0 0.0
    %376 = vmatprep.subr.mxu0 0.0
    %377 = vmatpush1.xpose.msra.mxu0 0.0
    %378 = vmatprep.subr.mxu0 0.0
    %379 = vmatpush1.xpose.msra.mxu0 0.0
    %380 = vmatprep.mubr.f32.mxu0 0.0
    %381 = vmatmul.mubr.f32.gmra.mrb[0].mxu0 %v175
    %v382 = vpop.f32.mrb[0].mxu0
    %v383 = vadd.f32 0.0, %v382
    %v384 = vpop.f32.mrb[0].mxu0
    %385 = vdwg.mxu0
    %386 = vmatprep.subr.mxu0 0.0
    %387 = vmatpush1.xpose.msra.mxu0 %v306
    %388 = vmatprep.subr.mxu0 0.0
    %389 = vmatpush1.xpose.msra.mxu0 %v312
    %390 = vmatprep.subr.mxu0 0.0
    %391 = vmatpush1.xpose.msra.mxu0 0.0
    %392 = vmatprep.subr.mxu0 0.0
    %393 = vmatpush1.xpose.msra.mxu0 0.0
    %394 = vmatprep.subr.mxu0 0.0
    %395 = vmatpush1.xpose.msra.mxu0 0.0
    %396 = vmatprep.subr.mxu0 0.0
    %397 = vmatpush1.xpose.msra.mxu0 0.0
    %398 = vmatprep.subr.mxu0 0.0
    %399 = vmatpush1.xpose.msra.mxu0 0.0
    %400 = vmatprep.subr.mxu0 0.0
    %401 = vmatpush1.xpose.msra.mxu0 0.0
    %402 = vmatprep.subr.mxu0 0.0
    %403 = vmatpush1.xpose.msra.mxu0 0.0
    %404 = vmatprep.subr.mxu0 0.0
    %405 = vmatpush1.xpose.msra.mxu0 0.0
    %406 = vmatprep.subr.mxu0 0.0
    %407 = vmatpush1.xpose.msra.mxu0 0.0
    %408 = vmatprep.subr.mxu0 0.0
    %409 = vmatpush1.xpose.msra.mxu0 0.0
    %410 = vmatprep.subr.mxu0 0.0
    %411 = vmatpush1.xpose.msra.mxu0 0.0
    %412 = vmatprep.subr.mxu0 0.0
    %413 = vmatpush1.xpose.msra.mxu0 0.0
    %414 = vmatprep.subr.mxu0 0.0
    %415 = vmatpush1.xpose.msra.mxu0 0.0
    %416 = vmatprep.subr.mxu0 0.0
    %417 = vmatpush1.xpose.msra.mxu0 0.0
    %418 = vmatprep.subr.mxu0 0.0
    %419 = vmatpush1.xpose.msra.mxu0 0.0
    %420 = vmatprep.subr.mxu0 0.0
    %421 = vmatpush1.xpose.msra.mxu0 0.0
    %422 = vmatprep.subr.mxu0 0.0
    %423 = vmatpush1.xpose.msra.mxu0 0.0
    %424 = vmatprep.subr.mxu0 0.0
    %425 = vmatpush1.xpose.msra.mxu0 0.0
    %426 = vmatprep.subr.mxu0 0.0
    %427 = vmatpush1.xpose.msra.mxu0 0.0
    %428 = vmatprep.subr.mxu0 0.0
    %429 = vmatpush1.xpose.msra.mxu0 0.0
    %430 = vmatprep.subr.mxu0 0.0
    %431 = vmatpush1.xpose.msra.mxu0 0.0
    %432 = vmatprep.subr.mxu0 0.0
    %433 = vmatpush1.xpose.msra.mxu0 0.0
    %434 = vmatprep.subr.mxu0 0.0
    %435 = vmatpush1.xpose.msra.mxu0 0.0
    %436 = vmatprep.subr.mxu0 0.0
    %437 = vmatpush1.xpose.msra.mxu0 0.0
    %438 = vmatprep.subr.mxu0 0.0
    %439 = vmatpush1.xpose.msra.mxu0 0.0
    %440 = vmatprep.subr.mxu0 0.0
    %441 = vmatpush1.xpose.msra.mxu0 0.0
    %442 = vmatprep.subr.mxu0 0.0
    %443 = vmatpush1.xpose.msra.mxu0 0.0
    %444 = vmatprep.subr.mxu0 0.0
    %445 = vmatpush1.xpose.msra.mxu0 0.0
    %446 = vmatprep.subr.mxu0 0.0
    %447 = vmatpush1.xpose.msra.mxu0 0.0
    %448 = vmatprep.subr.mxu0 0.0
    %449 = vmatpush1.xpose.msra.mxu0 0.0
    %450 = vmatprep.mubr.f32.mxu0 0.0
    %451 = vmatmul.mubr.f32.gmra.mrb[0].mxu0 %v180
    %v452 = vpop.f32.mrb[0].mxu0
    %v453 = vadd.f32 0.0, %v452
    %v454 = vpop.f32.mrb[0].mxu0
    %455 = vdwg.mxu0
    %v456 = vmul.f32 %v383, 0.088388346
    %v457 = vmul.f32 %v453, 0.088388346
    %vm458 = vcmask 130048
    %v459 = vsel %vm458, %v456, -inf
    %460 = vmax.xlane.f32.xlu0 %v459
    %v461 = vpop.xlane.xlu0 %460
    %v462 = vsel %vm458, %v457, -inf
    %463 = vmax.xlane.f32.xlu0 %v462
    %v464 = vpop.xlane.xlu0 %463
    %v465 = vsub.f32 %v456, %v461
    %v466 = vsub.f32 %v457, %v464
    %v467 = vmul.f32 %v465, 1.442695
    %v468 = vpow.pop %v467
    %v469 = vmul.f32 %v466, 1.442695
    %v470 = vpow.pop %v469
    %v471 = vsel %vm458, %v468, 0.0
    %472 = vadd.xlane.f32.xlu0 %v471
    %v473 = vpop.xlane.xlu0 %472
    %v474 = vsel %vm458, %v470, 0.0
    %475 = vadd.xlane.f32.xlu0 %v474
    %v476 = vpop.xlane.xlu0 %475
    %v477 = vrcp.pop %v473
    %v478 = vmul.f32 %v468, %v477
    %v479 = vrcp.pop %v476
    %v480 = vmul.f32 %v470, %v479
    %v482 = vsel %vm458, %v478, 0
    %484 = vmatprep.subr.mxu0 0.0
    %485 = vmatpush1.msra.mxu0 %v296
    %486 = vmatprep.subr.mxu0 0.0
    %487 = vmatpush1.msra.mxu0 %v302
    %488 = vmatprep.subr.mxu0 0.0
    %489 = vmatpush1.msra.mxu0 0.0
    %490 = vmatprep.subr.mxu0 0.0
    %491 = vmatpush1.msra.mxu0 0.0
    %492 = vmatprep.subr.mxu0 0.0
    %493 = vmatpush1.msra.mxu0 0.0
    %494 = vmatprep.subr.mxu0 0.0
    %495 = vmatpush1.msra.mxu0 0.0
    %496 = vmatprep.subr.mxu0 0.0
    %497 = vmatpush1.msra.mxu0 0.0
    %498 = vmatprep.subr.mxu0 0.0
    %499 = vmatpush1.msra.mxu0 0.0
    %500 = vmatprep.subr.mxu0 0.0
    %501 = vmatpush1.msra.mxu0 0.0
    %502 = vmatprep.subr.mxu0 0.0
    %503 = vmatpush1.msra.mxu0 0.0
    %504 = vmatprep.subr.mxu0 0.0
    %505 = vmatpush1.msra.mxu0 0.0
    %506 = vmatprep.subr.mxu0 0.0
    %507 = vmatpush1.msra.mxu0 0.0
    %508 = vmatprep.subr.mxu0 0.0
    %509 = vmatpush1.msra.mxu0 0.0
    %510 = vmatprep.subr.mxu0 0.0
    %511 = vmatpush1.msra.mxu0 0.0
    %512 = vmatprep.subr.mxu0 0.0
    %513 = vmatpush1.msra.mxu0 0.0
    %514 = vmatprep.subr.mxu0 0.0
    %515 = vmatpush1.msra.mxu0 0.0
    %516 = vmatprep.subr.mxu0 0.0
    %517 = vmatpush1.msra.mxu0 0.0
    %518 = vmatprep.subr.mxu0 0.0
    %519 = vmatpush1.msra.mxu0 0.0
    %520 = vmatprep.subr.mxu0 0.0
    %521 = vmatpush1.msra.mxu0 0.0
    %522 = vmatprep.subr.mxu0 0.0
    %523 = vmatpush1.msra.mxu0 0.0
    %524 = vmatprep.subr.mxu0 0.0
    %525 = vmatpush1.msra.mxu0 0.0
    %526 = vmatprep.subr.mxu0 0.0
    %527 = vmatpush1.msra.mxu0 0.0
    %528 = vmatprep.subr.mxu0 0.0
    %529 = vmatpush1.msra.mxu0 0.0
    %530 = vmatprep.subr.mxu0 0.0
    %531 = vmatpush1.msra.mxu0 0.0
    %532 = vmatprep.subr.mxu0 0.0
    %533 = vmatpush1.msra.mxu0 0.0
    %534 = vmatprep.subr.mxu0 0.0
    %535 = vmatpush1.msra.mxu0 0.0
    %536 = vmatprep.subr.mxu0 0.0
    %537 = vmatpush1.msra.mxu0 0.0
    %538 = vmatprep.subr.mxu0 0.0
    %539 = vmatpush1.msra.mxu0 0.0
    %540 = vmatprep.subr.mxu0 0.0
    %541 = vmatpush1.msra.mxu0 0.0
    %542 = vmatprep.subr.mxu0 0.0
    %543 = vmatpush1.msra.mxu0 0.0
    %544 = vmatprep.subr.mxu0 0.0
    %545 = vmatpush1.msra.mxu0 0.0
    %546 = vmatprep.subr.mxu0 0.0
    %547 = vmatpush1.msra.mxu0 0.0
    %548 = vmatprep.mubr.f32.mxu0 0.0
    %549 = vmatmul.mubr.f32.gmra.mrb[0].mxu0 %v482
    %v550 = vpop.f32.mrb[0].mxu0
    %v551 = vadd.f32 0.0, %v550
    %v552 = vpop.f32.mrb[0].mxu0
    %553 = vdwg.mxu0
    %v555 = vsel %vm458, %v480, 0
    %557 = vmatprep.subr.mxu0 0.0
    %558 = vmatpush1.msra.mxu0 %v308
    %559 = vmatprep.subr.mxu0 0.0
    %560 = vmatpush1.msra.mxu0 %v314
    %561 = vmatprep.subr.mxu0 0.0
    %562 = vmatpush1.msra.mxu0 0.0
    %563 = vmatprep.subr.mxu0 0.0
    %564 = vmatpush1.msra.mxu0 0.0
    %565 = vmatprep.subr.mxu0 0.0
    %566 = vmatpush1.msra.mxu0 0.0
    %567 = vmatprep.subr.mxu0 0.0
    %568 = vmatpush1.msra.mxu0 0.0
    %569 = vmatprep.subr.mxu0 0.0
    %570 = vmatpush1.msra.mxu0 0.0
    %571 = vmatprep.subr.mxu0 0.0
    %572 = vmatpush1.msra.mxu0 0.0
    %573 = vmatprep.subr.mxu0 0.0
    %574 = vmatpush1.msra.mxu0 0.0
    %575 = vmatprep.subr.mxu0 0.0
    %576 = vmatpush1.msra.mxu0 0.0
    %577 = vmatprep.subr.mxu0 0.0
    %578 = vmatpush1.msra.mxu0 0.0
    %579 = vmatprep.subr.mxu0 0.0
    %580 = vmatpush1.msra.mxu0 0.0
    %581 = vmatprep.subr.mxu0 0.0
    %582 = vmatpush1.msra.mxu0 0.0
    %583 = vmatprep.subr.mxu0 0.0
    %584 = vmatpush1.msra.mxu0 0.0
    %585 = vmatprep.subr.mxu0 0.0
    %586 = vmatpush1.msra.mxu0 0.0
    %587 = vmatprep.subr.mxu0 0.0
    %588 = vmatpush1.msra.mxu0 0.0
    %589 = vmatprep.subr.mxu0 0.0
    %590 = vmatpush1.msra.mxu0 0.0
    %591 = vmatprep.subr.mxu0 0.0
    %592 = vmatpush1.msra.mxu0 0.0
    %593 = vmatprep.subr.mxu0 0.0
    %594 = vmatpush1.msra.mxu0 0.0
    %595 = vmatprep.subr.mxu0 0.0
    %596 = vmatpush1.msra.mxu0 0.0
    %597 = vmatprep.subr.mxu0 0.0
    %598 = vmatpush1.msra.mxu0 0.0
    %599 = vmatprep.subr.mxu0 0.0
    %600 = vmatpush1.msra.mxu0 0.0
    %601 = vmatprep.subr.mxu0 0.0
    %602 = vmatpush1.msra.mxu0 0.0
    %603 = vmatprep.subr.mxu0 0.0
    %604 = vmatpush1.msra.mxu0 0.0
    %605 = vmatprep.subr.mxu0 0.0
    %606 = vmatpush1.msra.mxu0 0.0
    %607 = vmatprep.subr.mxu0 0.0
    %608 = vmatpush1.msra.mxu0 0.0
    %609 = vmatprep.subr.mxu0 0.0
    %610 = vmatpush1.msra.mxu0 0.0
    %611 = vmatprep.subr.mxu0 0.0
    %612 = vmatpush1.msra.mxu0 0.0
    %613 = vmatprep.subr.mxu0 0.0
    %614 = vmatpush1.msra.mxu0 0.0
    %615 = vmatprep.subr.mxu0 0.0
    %616 = vmatpush1.msra.mxu0 0.0
    %617 = vmatprep.subr.mxu0 0.0
    %618 = vmatpush1.msra.mxu0 0.0
    %619 = vmatprep.subr.mxu0 0.0
    %620 = vmatpush1.msra.mxu0 0.0
    %621 = vmatprep.mubr.f32.mxu0 0.0
    %622 = vmatmul.mubr.f32.gmra.mrb[0].mxu0 %v555
    %v623 = vpop.f32.mrb[0].mxu0
    %v624 = vadd.f32 0.0, %v623
    %v625 = vpop.f32.mrb[0].mxu0
    %626 = vdwg.mxu0
    %627 = vst [vmem:[#allocation10] sm:$0xff] %v551
    %628 = vst [vmem:[#allocation10 + $0x8] sm:$0xff] %v624
    // Predicated region
    $region42: #{tpu_custom_call.1} parent=1 // pred_check
      _
    $region43: #{tpu_custom_call.1} parent=1 // pred_check_branch
      %630 = sbr.rel (0) target = $region45
    $region44: #{tpu_custom_call.1} parent=1 // pred_region
      %s632 = ssub.s32 256, 256
      %633 = vsyncadd [#allocation4], %s632
      %s634 = sshll.u32 [#allocation10], 4
      %s635 = int_to_ptr.vmem [resolvable:$true] %s634
      %640 = dma.vmem_to_hbm [thread:$0]  %s635, 256, %s6, [#allocation4], 128, 128, 8
    $region45: #{tpu_custom_call.1} parent=1 // pred_fallthru
      _
    // Predicated region
    $region46: #{tpu_custom_call.1} parent=1 // pred_check
      _
    $region47: #{tpu_custom_call.1} parent=1 // pred_check_branch
      %642 = sbr.rel (0) target = $region49
    $region48: #{tpu_custom_call.1} parent=1 // pred_region
      %643 = dma.done [#allocation4], 256
    $region49: #{tpu_custom_call.1} parent=1 // pred_fallthru
      _
    %644 = vsyncpa [#allocation3], 1
    %645 = vsyncpa [#allocation6], 1
    %646 = vsyncpa [#allocation9], 1
    %647 = vsyncpa [#allocation4], 1

</llo_original>
